<compile_context>
chip_gen: v7x
topology: tpu7x:2x2x1
jax: 0.10.0
libtpu: 0.0.40
codegen_flags: <defaults>
</compile_context>

<pallas_src>
import jax
import jax.numpy as jnp
from jax.experimental import pallas as pl
from jax.experimental.pallas import tpu as pltpu

_OFFSET = 0.30885


def _mish_sqrt_kernel(x_ref, o_ref):
    x = x_ref[...].astype(jnp.float32)
    # tanh(softplus(x)) with a single exp (EUP); the rest is cheap VPU work:
    #   let e = exp(-|x|) in (0, 1]
    #   x >= 0: tanh(sp) = (1 + 2e)   / (1 + 2e + 2e^2)
    #   x <  0: tanh(sp) = (e^2 + 2e) / (e^2 + 2e + 2)
    e = jnp.exp(-jnp.abs(x))
    two_e = 2.0 * e
    e2 = e * e
    pos = x >= 0.0
    num = jnp.where(pos, 1.0 + two_e, e2 + two_e)
    den = jnp.where(pos, 1.0 + two_e + 2.0 * e2, e2 + two_e + 2.0)
    mish = x * (num / den)  # exact divide (not approx reciprocal) for accuracy
    # mish's minimum is ~-0.30884, so mish + 0.30885 can be ~1e-5; clamp at 0
    # as free VPU insurance against NaN from rounding.
    y = jnp.sqrt(jnp.maximum(mish + _OFFSET, 0.0)) - _OFFSET
    o_ref[...] = y.astype(o_ref.dtype)


def mish_sqrt(x: jax.Array, *, block_rows: int = 4096) -> jax.Array:
    """Elementwise MishSqrt via Pallas. Accepts any shape (NCHW expected)."""
    orig_shape = x.shape
    orig_dtype = x.dtype
    itemsize = jnp.dtype(orig_dtype).itemsize

    lanes = 128
    # Sublane tile: 8 rows for 4-byte dtypes, 16 for 2-byte, 32 for 1-byte.
    sub = max(8, 32 // itemsize)

    flat = x.reshape(-1)
    n = flat.shape[0]
    tile_elems = sub * lanes
    n_pad = pl.cdiv(n, tile_elems) * tile_elems
    padded = n_pad != n
    if padded:
        flat = jnp.pad(flat, (0, n_pad - n))  # only when actually needed
    rows = n_pad // lanes
    x2d = flat.reshape(rows, lanes)

    # Big lane-dense blocks, always a multiple of `sub`; never collapses for
    # awkward row counts because the grid uses cdiv + masked tail.
    br = max(sub, (min(block_rows, rows) // sub) * sub)
    # Keep at least 2 grid steps when possible so the "parallel" axis can be
    # sharded across both TensorCores on v7x (free on v5e/v6e).
    if rows >= 2 * sub:
        br = min(br, max(sub, (rows // 2) // sub * sub))
    grid = (pl.cdiv(rows, br),)

    # 2 double-buffered input blocks + 2 output blocks, plus headroom.
    # (v5e scoped-VMEM default is only 16 MiB; raise the limit for big blocks,
    #  but stay well under v7x's 64 MiB physical VMEM.)
    block_bytes = br * lanes * itemsize
    vmem_limit = min(max(16 * 1024 * 1024, 4 * block_bytes + (2 << 20)),
                     60 * 1024 * 1024)

    out2d = pl.pallas_call(
        _mish_sqrt_kernel,
        out_shape=jax.ShapeDtypeStruct((rows, lanes), orig_dtype),
        grid_spec=pltpu.PrefetchScalarGridSpec(
            num_scalar_prefetch=0,
            grid=grid,
            in_specs=[pl.BlockSpec((br, lanes), lambda i: (i, 0))],
            out_specs=pl.BlockSpec((br, lanes), lambda i: (i, 0)),
        ),
        compiler_params=pltpu.CompilerParams(
            dimension_semantics=("parallel",),
            vmem_limit_bytes=vmem_limit,
        ),
    )(x2d)

    if padded:
        out = out2d.reshape(-1)[:n].reshape(orig_shape)
    else:
        out = out2d.reshape(orig_shape)
    return out


def _reference(x):
    # Pure-JAX reference (matches torch.nn.functional.mish semantics).
    xf = x.astype(jnp.float32)
    mish = xf * jnp.tanh(jax.nn.softplus(xf))
    return (jnp.sqrt(mish + _OFFSET) - _OFFSET).astype(x.dtype)


def _check(x, **kwargs):
    y = jax.block_until_ready(mish_sqrt(x, **kwargs))
    y_ref = _reference(x)
    assert y.shape == x.shape and y.dtype == x.dtype
    # Near the mish minimum (x ~ -1.19), mish + 0.30885 ~ 1e-5 and the sqrt
    # amplifies few-ULP differences between formulations, so allow a small
    # absolute slack there while staying tight elsewhere.
    assert jnp.allclose(y, y_ref, atol=2e-4, rtol=1e-5), "mismatch vs reference"


if __name__ == "__main__":
    # Shape implied by the module spec (NCHW activations).
    x = jax.random.normal(jax.random.PRNGKey(0), (2, 4, 16, 16), dtype=jnp.float32)
    _check(x)

    # Exercise the cdiv / masked-tail path (rows=40, br=16 -> 3 grid steps).
    x2 = jax.random.normal(jax.random.PRNGKey(1), (5, 8, 128), dtype=jnp.float32)
    _check(x2, block_rows=16)

    # Exercise the pad + tail-slice path (462 elements, not a multiple of 1024).
    x3 = jax.random.normal(jax.random.PRNGKey(2), (2, 3, 7, 11), dtype=jnp.float32)
    _check(x3)

    print("KERNEL_OK")
</pallas_src>

<mosaic_0001>
module attributes {stable_mosaic.version = 11 : i64} {
  func.func @_mish_sqrt_kernel(%arg0: i32, %arg1: memref<8x128xf32, #tpu.memory_space<vmem>>, %arg2: memref<8x128xf32, #tpu.memory_space<vmem>>) attributes {dimension_semantics = [#tpu.dimension_semantics<parallel>], iteration_bounds = array<i64: 2>, scalar_prefetch = 0 : i64, scratch_operands = 0 : i64, tpu.core_type = #tpu.core_type<tc>, window_params = [{transform_indices = @transform_0, window_bounds = array<i64: 8, 128>}, {transform_indices = @transform_1, window_bounds = array<i64: 8, 128>}]} {
    %c0 = arith.constant 0 : index
    %c0_0 = arith.constant 0 : index
    %0 = vector.load %arg1[%c0, %c0_0] : memref<8x128xf32, #tpu.memory_space<vmem>>, vector<8x128xf32>
    %1 = math.absf %0 : vector<8x128xf32>
    %cst = arith.constant 0.000000e+00 : f32
    %2 = vector.broadcast %cst : f32 to vector<8x128xf32>
    %3 = arith.subf %2, %1 : vector<8x128xf32>
    %4 = math.exp %3 : vector<8x128xf32>
    %cst_1 = arith.constant 2.000000e+00 : f32
    %5 = vector.broadcast %cst_1 : f32 to vector<8x128xf32>
    %6 = arith.mulf %5, %4 : vector<8x128xf32>
    %7 = arith.mulf %4, %4 : vector<8x128xf32>
    %cst_2 = arith.constant 0.000000e+00 : f32
    %8 = vector.broadcast %cst_2 : f32 to vector<8x128xf32>
    %9 = arith.cmpf oge, %0, %8 : vector<8x128xf32>
    %cst_3 = arith.constant 1.000000e+00 : f32
    %10 = vector.broadcast %cst_3 : f32 to vector<8x128xf32>
    %11 = arith.addf %10, %6 : vector<8x128xf32>
    %12 = arith.addf %7, %6 : vector<8x128xf32>
    %13 = arith.select %9, %11, %12 : vector<8x128xi1>, vector<8x128xf32>
    %cst_4 = arith.constant 1.000000e+00 : f32
    %14 = vector.broadcast %cst_4 : f32 to vector<8x128xf32>
    %15 = arith.addf %14, %6 : vector<8x128xf32>
    %cst_5 = arith.constant 2.000000e+00 : f32
    %16 = vector.broadcast %cst_5 : f32 to vector<8x128xf32>
    %17 = arith.mulf %16, %7 : vector<8x128xf32>
    %18 = arith.addf %15, %17 : vector<8x128xf32>
    %19 = arith.addf %7, %6 : vector<8x128xf32>
    %cst_6 = arith.constant 2.000000e+00 : f32
    %20 = vector.broadcast %cst_6 : f32 to vector<8x128xf32>
    %21 = arith.addf %19, %20 : vector<8x128xf32>
    %22 = arith.select %9, %18, %21 : vector<8x128xi1>, vector<8x128xf32>
    %23 = arith.divf %13, %22 : vector<8x128xf32>
    %24 = arith.mulf %0, %23 : vector<8x128xf32>
    %cst_7 = arith.constant 3.088500e-01 : f32
    %25 = vector.broadcast %cst_7 : f32 to vector<8x128xf32>
    %26 = arith.addf %24, %25 : vector<8x128xf32>
    %cst_8 = arith.constant 0.000000e+00 : f32
    %27 = vector.broadcast %cst_8 : f32 to vector<8x128xf32>
    %28 = arith.maximumf %26, %27 : vector<8x128xf32>
    %29 = math.sqrt %28 : vector<8x128xf32>
    %cst_9 = arith.constant 3.088500e-01 : f32
    %30 = vector.broadcast %cst_9 : f32 to vector<8x128xf32>
    %31 = arith.subf %29, %30 : vector<8x128xf32>
    %c0_10 = arith.constant 0 : index
    %c0_11 = arith.constant 0 : index
    %32 = vector.load %arg2[%c0_10, %c0_11] : memref<8x128xf32, #tpu.memory_space<vmem>>, vector<8x128xf32>
    tpu.vector_store %arg2[%c0_10, %c0_11], %31 {strides = array<i32>} : memref<8x128xf32, #tpu.memory_space<vmem>>, vector<8x128xf32>,
    return
  }
  func.func @transform_0(%arg0: i32) -> (i32, i32) {
    %c0_i32 = arith.constant 0 : i32
    %c0_i32_0 = arith.constant 0 : i32
    return %arg0, %c0_i32 : i32, i32
  }
  func.func @transform_1(%arg0: i32) -> (i32, i32) {
    %c0_i32 = arith.constant 0 : i32
    %c0_i32_0 = arith.constant 0 : i32
    return %arg0, %c0_i32 : i32, i32
  }
}

</mosaic_0001>

<llo_original>
// kernel: tpu_custom_call.1
$region0: #{tpu_custom_call.1}
  #allocation0 [shape = 'u32[]', space=smem, size = 0x4, offset = 0x4, fixed_abs, tag = 'smem constant byte address 0x4 - core index']
  #allocation1 [shape = 'u32[144,128]{1,0:T(1,128)}', space=vmem, size = 0x12000, scoped, tag = 'internal scratch']
  %s0 = inlined_call_operand.hbm [shape: f32[16,128], index: 0, kind: input, shape index: {}]
  %s1 = inlined_call_operand.hbm [shape: f32[16,128], index: 1, kind: output, shape index: {}]
  %s2 = sld [smem:[#allocation0]]
  $region41: #{tpu_custom_call.1} parent=0
    _
  %s4 = ssub.s32 1, %s2
  %s5 = scalar_select 0, %s4, %s2
  $region1: #{tpu_custom_call.1} parent=0
    #allocation2 [shape = 'u8[8192]{0}', space=vmem, size = 0x2000, scoped, tag = 'input window, operand 0']
    #allocation3 [shape = 's32[2]{0}', space=sflag, size = 0x8, scoped, tag = 'scoped memory for tpu_custom_call.1']
    #allocation4 [shape = 's32[2]{0}', space=sflag, size = 0x8, scoped, tag = 'scoped memory for tpu_custom_call.1']
    #allocation5 [shape = 'u8[8192]{0}', space=vmem, size = 0x2000, scoped, tag = 'output window, operand 0']
    %6 = vsyncpa [#allocation3], 0
    %s7 = scalar_lea.sflag [#allocation3], 1
    %8 = vsyncpa %s7, 0
    %9 = vsyncpa [#allocation4], 0
    %s10 = scalar_lea.sflag [#allocation4], 1
    %11 = vsyncpa %s10, 0
    loop: start=0, step=1, limit=4
    $region2: #{tpu_custom_call.1} parent=1 // loop_pre_header
      _
    $region3: #{tpu_custom_call.1} parent=1 // loop_header
      %s13 = sphi 0, %s17
      %p14 = scmp.ge.s32.totalorder %s13, 4
      %s23 = sphi 0, %s25
      %s26 = sphi 0, %s23
      %s27 = sphi 0, %s26
      %s43 = sphi 0, %s27
      %s49 = sphi 0, %s51
      %s52 = sphi 0, %s49
      %s53 = sphi 0, %s52
      %s69 = sphi 0, %s53
    $region4: #{tpu_custom_call.1} parent=1 // loop_header_branch
      %16 = sbr.rel (%p14) target = $region8
    $region5: #{tpu_custom_call.1} parent=1 // loop_body
      %s18 = ssub.s32 %s13, 1
      %s19 = ssub.s32 %s13, 2
      %s20 = sadd.s32 %s13, 1
      %s21 = ssub.s32 %s13, %s20
      %p22 = scmp.eq.s32.totalorder %s21, 0
      %s24 = sadd.s32 %s23, 1
      %s25 = scalar_select %p22, %s23, %s24
      %p28 = pneg %p22
      %p29 = scmp.eq.s32.totalorder %s13, 1
      %p30 = por %p28, %p29
      %p31 = scmp.ne.s32.totalorder %s23, %s26
      %p32 = scmp.eq.s32.totalorder %s13, 0
      %p33 = por %p31, %p32
      %p34 = scmp.ne.s32.totalorder %s23, %s26
      %p35 = scmp.eq.s32.totalorder %s18, 1
      %p36 = por %p34, %p35
      %p37 = scmp.ne.s32.totalorder %s26, %s27
      %p38 = scmp.eq.s32.totalorder %s18, 0
      %p39 = por %p37, %p38
      %p40 = scmp.ne.s32.totalorder %s26, %s27
      %p41 = scmp.eq.s32.totalorder %s19, 1
      %p42 = por %p40, %p41
      %p44 = scmp.ne.s32.totalorder %s27, %s43
      %p45 = scmp.eq.s32.totalorder %s19, 0
      %p46 = por %p44, %p45
      %s47 = ssub.s32 %s13, %s20
      %p48 = scmp.eq.s32.totalorder %s47, 0
      %s50 = sadd.s32 %s49, 1
      %s51 = scalar_select %p48, %s49, %s50
      %p54 = pneg %p48
      %p55 = scmp.eq.s32.totalorder %s13, 1
      %p56 = por %p54, %p55
      %p57 = scmp.ne.s32.totalorder %s49, %s52
      %p58 = scmp.eq.s32.totalorder %s13, 0
      %p59 = por %p57, %p58
      %p60 = scmp.ne.s32.totalorder %s49, %s52
      %p61 = scmp.eq.s32.totalorder %s18, 1
      %p62 = por %p60, %p61
      %p63 = scmp.ne.s32.totalorder %s52, %s53
      %p64 = scmp.eq.s32.totalorder %s18, 0
      %p65 = por %p63, %p64
      %p66 = scmp.ne.s32.totalorder %s52, %s53
      %p67 = scmp.eq.s32.totalorder %s19, 1
      %p68 = por %p66, %p67
      %p70 = scmp.ne.s32.totalorder %s53, %s69
      %p71 = scmp.eq.s32.totalorder %s19, 0
      %p72 = por %p70, %p71
      %p73 = scmp.le.s32.totalorder 1, %s13
      %p74 = scmp.lt.s32.totalorder %s13, 3
      %p75 = pnand %p73, %p74
      %p76 = pneg %p75
      // Predicated region
      $region9: #{tpu_custom_call.1} parent=5 // pred_check
        _
      $region10: #{tpu_custom_call.1} parent=5 // pred_check_branch
        %78 = sbr.rel (%p75) target = $region12
      $region11: #{tpu_custom_call.1} parent=5 // pred_region
        %s79 = ssub.s32 %s13, 1
      $region12: #{tpu_custom_call.1} parent=5 // pred_fallthru
        _
      %p80 = scmp.lt.s32.totalorder %s13, 2
      // Predicated region
      $region13: #{tpu_custom_call.1} parent=5 // pred_check
        %p81 = pneg %p80
      $region14: #{tpu_custom_call.1} parent=5 // pred_check_branch
        %83 = sbr.rel (%p81) target = $region16
      $region15: #{tpu_custom_call.1} parent=5 // pred_region
        // Predicated region
        $region17: #{tpu_custom_call.1} parent=15 // pred_check
          %p84 = pneg %p33
        $region18: #{tpu_custom_call.1} parent=15 // pred_check_branch
          %86 = sbr.rel (%p84) target = $region20
        $region19: #{tpu_custom_call.1} parent=15 // pred_region
          %s87 = sand.u32 %s23, 1
          %s88 = scalar_lea.sflag [#allocation3], %s87
          %s89 = sand.u32 %s23, 1
          %s90 = smul.addr %s89, 8
          %s91 = scalar_lea.vmem [#allocation2], %s90
          %s93 = ssub.s32 128, 128
          %94 = vsyncadd %s88, %s93
          %s95 = smul.addr %s13, 128
          %s96 = scalar_lea.hbm %s0, %s95
          %s98 = sshll.u32 %s91, 4
          %s99 = int_to_ptr.vmem [resolvable:$true] %s98
          %101 = dma.hbm_to_vmem [thread:$0]  %s96, 128, %s99, %s88
        $region20: #{tpu_custom_call.1} parent=15 // pred_fallthru
          _
      $region16: #{tpu_custom_call.1} parent=5 // pred_fallthru
        _
      %p102 = scmp.le.s32.totalorder 1, %s13
      %p103 = scmp.lt.s32.totalorder %s13, 3
      %p104 = pnand %p102, %p103
      %p105 = pneg %p104
      // Predicated region
      $region21: #{tpu_custom_call.1} parent=5 // pred_check
        _
      $region22: #{tpu_custom_call.1} parent=5 // pred_check_branch
        %107 = sbr.rel (%p104) target = $region24
      $region23: #{tpu_custom_call.1} parent=5 // pred_region
        %s108 = ssub.s32 %s13, 1
        %s109 = sand.u32 %s26, 1
        %s110 = scalar_lea.sflag [#allocation3], %s109
        %s111 = sand.u32 %s26, 1
        %s112 = smul.addr %s111, 8
        %s113 = scalar_lea.vmem [#allocation2], %s112
        // Predicated region
        $region25: #{tpu_custom_call.1} parent=23 // pred_check
          %p114 = pneg %p39
        $region26: #{tpu_custom_call.1} parent=23 // pred_check_branch
          %116 = sbr.rel (%p114) target = $region28
        $region27: #{tpu_custom_call.1} parent=23 // pred_region
          %117 = dma.done %s110, 128
        $region28: #{tpu_custom_call.1} parent=23 // pred_fallthru
          _
        %s118 = sand.u32 %s26, 1
        %s119 = scalar_lea.sflag [#allocation3], %s118
        %s120 = sand.u32 %s26, 1
        %s121 = smul.addr %s120, 8
        %s122 = scalar_lea.vmem [#allocation2], %s121
        %p123 = pneg %p39
        %p124 = pneg %p36
        %p125 = pneg %p65
        %p126 = pneg %p62
        %s127 = sand.u32 %s52, 1
        %s128 = scalar_lea.sflag [#allocation4], %s127
        %s129 = sand.u32 %s52, 1
        %s130 = smul.addr %s129, 8
        %s131 = scalar_lea.vmem [#allocation5], %s130
        %v132 = vld [vmem:[%s113] sm:$0xff]
        %v133 = vand.u32 2147483647, %v132
        %v134 = vsub.f32 0.0, %v133
        %v135 = vmul.f32 %v134, 1.442695
        %v136 = vpow.pop %v135
        %v137 = vmul.f32 %v136, 2.0
        %v138 = vmul.f32 %v136, %v136
        %vm139 = vcmp.ge.f32.partialorder %v132, 0.0
        %v140 = vadd.f32 %v137, 1.0
        %v141 = vadd.f32 %v138, %v137
        %v142 = vsel %vm139, %v140, %v141
        %v143 = vmul.f32 %v138, 2.0
        %v144 = vadd.f32 %v140, %v143
        %v145 = vadd.f32 %v141, 2.0
        %v146 = vsel %vm139, %v144, %v145
        %v147 = vrcp.pop %v146
        %v148 = vmul.f32 %v142, %v147
        %v149 = vmul.f32 %v132, %v148
        %v150 = vadd.f32 %v149, 0.30885
        %v151 = vmax.f32 %v150, 0.0
        %v152 = vrsqrt.pop %v151
        %v153 = vmul.f32 %v151, %v152
        %vm154 = vcmp.eq.f32.partialorder %v151, inf
        %v155 = vsel %vm154, %v151, %v153
        %vm156 = vcmp.eq.f32.partialorder %v151, 0.0
        %v157 = vand.u32 %v151, 2147483648
        %v158 = vsel %vm156, %v157, %v155
        %v159 = vsub.f32 %v158, 0.30885
        %160 = vst [vmem:[%s131] sm:$0xff] %v159
        %s161 = sand.u32 %s52, 1
        %s162 = scalar_lea.sflag [#allocation4], %s161
        %s163 = sand.u32 %s52, 1
        %s164 = smul.addr %s163, 8
        %s165 = scalar_lea.vmem [#allocation5], %s164
        // Predicated region
        $region29: #{tpu_custom_call.1} parent=23 // pred_check
          %p166 = pneg %p62
        $region30: #{tpu_custom_call.1} parent=23 // pred_check_branch
          %168 = sbr.rel (%p166) target = $region32
        $region31: #{tpu_custom_call.1} parent=23 // pred_region
          %s170 = ssub.s32 128, 128
          %171 = vsyncadd %s162, %s170
          %s172 = smul.addr %s18, 128
          %s173 = scalar_lea.hbm %s1, %s172
          %s175 = sshll.u32 %s165, 4
          %s176 = int_to_ptr.vmem [resolvable:$true] %s175
          %178 = dma.vmem_to_hbm [thread:$0]  %s176, 128, %s173, %s162
        $region32: #{tpu_custom_call.1} parent=23 // pred_fallthru
          _
      $region24: #{tpu_custom_call.1} parent=5 // pred_fallthru
        _
      %p179 = scmp.le.s32.totalorder 2, %s13
      // Predicated region
      $region33: #{tpu_custom_call.1} parent=5 // pred_check
        %p180 = pneg %p179
      $region34: #{tpu_custom_call.1} parent=5 // pred_check_branch
        %182 = sbr.rel (%p180) target = $region36
      $region35: #{tpu_custom_call.1} parent=5 // pred_region
        %s183 = ssub.s32 %s13, 2
        // Predicated region
        $region37: #{tpu_custom_call.1} parent=35 // pred_check
          %p184 = pneg %p68
        $region38: #{tpu_custom_call.1} parent=35 // pred_check_branch
          %186 = sbr.rel (%p184) target = $region40
        $region39: #{tpu_custom_call.1} parent=35 // pred_region
          %s187 = sand.u32 %s53, 1
          %s188 = scalar_lea.sflag [#allocation4], %s187
          %s189 = sand.u32 %s53, 1
          %s190 = smul.addr %s189, 8
          %s191 = scalar_lea.vmem [#allocation5], %s190
          %192 = dma.done %s188, 128
        $region40: #{tpu_custom_call.1} parent=35 // pred_fallthru
          _
      $region36: #{tpu_custom_call.1} parent=5 // pred_fallthru
        _
    $region6: #{tpu_custom_call.1} parent=1 // loop_footer
      %s17 = sadd.s32 1, %s13
    $region7: #{tpu_custom_call.1} parent=1 // loop_footer_branch
      %12 = sbr.rel target = $region3
    $region8: #{tpu_custom_call.1} parent=1 // loop_exit
      _
    %193 = vsyncpa [#allocation3], 1
    %s194 = scalar_lea.sflag [#allocation3], 1
    %195 = vsyncpa %s194, 1
    %196 = vsyncpa [#allocation4], 1
    %s197 = scalar_lea.sflag [#allocation4], 1
    %198 = vsyncpa %s197, 1

</llo_original>
